<compile_context>
chip_gen: v5e
topology: v5e:2x2
jax: 0.10.0
libtpu: 0.0.40
codegen_flags: <defaults>
</compile_context>

<pallas_src>
import jax
import jax.numpy as jnp
from jax.experimental import pallas as pl
from jax.experimental.pallas import tpu as pltpu


# ---------------------------------------------------------------------------
# Fused kernel: conv-as-matmul + (bias) + (BatchNorm) + (ReLU), one call.
# ---------------------------------------------------------------------------
def _make_fused_kernel(has_bias, bn_mode, relu, eps):
    """bn_mode: None | 'batch' (training-mode batch stats + affine)
               | 'affine' (pre-folded eval-mode scale/shift only)."""

    def kernel(*refs):
        i = 0
        p_ref = refs[i]; i += 1          # (K2C, NP)   im2col patches, NP on lanes
        w_ref = refs[i]; i += 1          # (Cout, K2C) conv weight (matmul LHS)
        b_ref = None
        if has_bias:
            b_ref = refs[i]; i += 1      # (Cout, 1)   conv bias
        g_ref = s_ref = None
        if bn_mode is not None:
            g_ref = refs[i]; i += 1      # (Cout, 1)   scale
            s_ref = refs[i]; i += 1      # (Cout, 1)   shift
        o_ref = refs[i]                  # (Cout, NP)  lane-dense output

        # One MXU matmul for the whole batch; result is lane-dense (NP lanes).
        acc = jnp.dot(w_ref[...], p_ref[...], preferred_element_type=jnp.float32)
        if has_bias:
            acc = acc + b_ref[...]
        if bn_mode == "batch":
            # BatchNorm2d training-mode forward: per-channel statistics over
            # N*H*W (a lane-axis reduction here), biased variance, eps in rsqrt.
            m = jnp.mean(acc, axis=1, keepdims=True)
            v = jnp.mean(jnp.square(acc - m), axis=1, keepdims=True)
            acc = (acc - m) * jax.lax.rsqrt(v + eps)
        if bn_mode is not None:
            acc = acc * g_ref[...] + s_ref[...]
        if relu:
            acc = jnp.maximum(acc, 0.0)
        o_ref[...] = acc

    return kernel


# ---------------------------------------------------------------------------
# Wrapper: NCHW in / NCHW out (matches the PyTorch module).
# ---------------------------------------------------------------------------
def basic_conv_forward(x, weight, *, bias=None, gamma=None, beta=None,
                       running_mean=None, running_var=None,
                       stride=1, padding=0, dilation=1, groups=1,
                       relu=True, bn=True, training=True, eps=1e-5):
    """Pallas forward of BasicConv: ReLU(BatchNorm2d(Conv2d(x))).

    x:      (N, Cin, H, W)       float32, NCHW (PyTorch layout)
    weight: (Cout, Cin, KH, KW)  float32, OIHW (PyTorch layout)
    """
    # TODO(synk): groups != 1 (grouped conv) not implemented; defaults use groups=1.
    assert groups == 1
    N, Cin, H, W = x.shape
    Cout, _, KH, KW = weight.shape
    sh = sw = int(stride)
    ph = pw = int(padding)
    dh = dw = int(dilation)
    H_o = (H + 2 * ph - dh * (KH - 1) - 1) // sh + 1
    W_o = (W + 2 * pw - dw * (KW - 1) - 1) // sw + 1
    P = H_o * W_o
    NP = N * P
    K2C = Cin * KH * KW

    # ---- im2col in the XLA wrapper: pure data re-arrangement, no MACs.
    # For large H*W, tile the NP axis and stream the KH*KW taps in-kernel.
    xp = jnp.pad(x.astype(jnp.float32), ((0, 0), (0, 0), (ph, ph), (pw, pw)))
    taps = []
    for kh in range(KH):
        for kw in range(KW):
            taps.append(xp[:, :,
                           kh * dh: kh * dh + (H_o - 1) * sh + 1: sh,
                           kw * dw: kw * dw + (W_o - 1) * sw + 1: sw])
    pat = jnp.stack(taps, axis=2).reshape(N, K2C, P)      # row = cin*KH*KW + kh*KW + kw
    pat = jnp.transpose(pat, (1, 0, 2)).reshape(K2C, NP)  # col = n*P + h*W_o + w

    w2d = weight.reshape(Cout, K2C).astype(jnp.float32)   # OIHW reshape matches row order

    has_bias = bias is not None
    if bn:
        g = jnp.ones((Cout,), jnp.float32) if gamma is None else gamma.astype(jnp.float32)
        b = jnp.zeros((Cout,), jnp.float32) if beta is None else beta.astype(jnp.float32)
        if training:
            bn_mode, scale, shift = "batch", g, b
        else:
            rm = jnp.zeros((Cout,), jnp.float32) if running_mean is None else running_mean.astype(jnp.float32)
            rv = jnp.ones((Cout,), jnp.float32) if running_var is None else running_var.astype(jnp.float32)
            scale = g * jax.lax.rsqrt(rv + eps)
            shift = b - rm * scale
            bn_mode = "affine"
    else:
        bn_mode, scale, shift = None, None, None

    args = [pat, w2d]
    in_specs = [pl.BlockSpec((K2C, NP), lambda i: (0, 0)),
                pl.BlockSpec((Cout, K2C), lambda i: (0, 0))]
    if has_bias:
        args.append(bias.reshape(Cout, 1).astype(jnp.float32))
        in_specs.append(pl.BlockSpec((Cout, 1), lambda i: (0, 0)))
    if bn_mode is not None:
        args += [scale.reshape(Cout, 1), shift.reshape(Cout, 1)]
        in_specs += [pl.BlockSpec((Cout, 1), lambda i: (0, 0)),
                     pl.BlockSpec((Cout, 1), lambda i: (0, 0))]

    out = pl.pallas_call(
        _make_fused_kernel(has_bias, bn_mode, relu, eps),
        out_shape=jax.ShapeDtypeStruct((Cout, NP), jnp.float32),
        grid=(1,),
        in_specs=in_specs,
        out_specs=pl.BlockSpec((Cout, NP), lambda i: (0, 0)),
        compiler_params=pltpu.CompilerParams(dimension_semantics=("arbitrary",)),
    )(*args)

    # (Cout, N*P) -> (N, Cout, H_o, W_o): cheap XLA reshape/transpose of the output.
    return out.reshape(Cout, N, H_o, W_o).transpose(1, 0, 2, 3)


# ---------------------------------------------------------------------------
# Pure-JAX reference (correctness check only).
# ---------------------------------------------------------------------------
def basic_conv_ref(x, weight, *, bias=None, gamma=None, beta=None,
                   running_mean=None, running_var=None,
                   stride=1, padding=0, dilation=1,
                   relu=True, bn=True, training=True, eps=1e-5):
    out = jax.lax.conv_general_dilated(
        x, weight, window_strides=(stride, stride),
        padding=((padding, padding), (padding, padding)),
        rhs_dilation=(dilation, dilation),
        dimension_numbers=("NCHW", "OIHW", "NCHW"),
        precision=jax.lax.Precision.HIGHEST)
    Cout = weight.shape[0]
    if bias is not None:
        out = out + bias.reshape(1, Cout, 1, 1)
    if bn:
        g = jnp.ones((Cout,), jnp.float32) if gamma is None else gamma
        b = jnp.zeros((Cout,), jnp.float32) if beta is None else beta
        if training:
            m = jnp.mean(out, axis=(0, 2, 3), keepdims=True)
            v = jnp.mean(jnp.square(out - m), axis=(0, 2, 3), keepdims=True)
        else:
            rm = jnp.zeros((Cout,), jnp.float32) if running_mean is None else running_mean
            rv = jnp.ones((Cout,), jnp.float32) if running_var is None else running_var
            m = rm.reshape(1, Cout, 1, 1)
            v = rv.reshape(1, Cout, 1, 1)
        out = (out - m) * jax.lax.rsqrt(v + eps) * g.reshape(1, Cout, 1, 1) \
            + b.reshape(1, Cout, 1, 1)
    if relu:
        out = jnp.maximum(out, 0.0)
    return out


# ---------------------------------------------------------------------------
if __name__ == "__main__":
    key = jax.random.PRNGKey(0)
    kx, kw, kg, kb = jax.random.split(key, 4)

    # BasicConv(in_planes=4, out_planes=8, kernel_size=3, padding=1)  defaults:
    # stride=1, dilation=1, groups=1, relu=True, bn=True, bias=False.
    N, Cin, H, W = 2, 4, 16, 16
    Cout, K = 8, 3
    x = jax.random.normal(kx, (N, Cin, H, W), jnp.float32)
    weight = 0.1 * jax.random.normal(kw, (Cout, Cin, K, K), jnp.float32)
    gamma = 1.0 + 0.1 * jax.random.normal(kg, (Cout,), jnp.float32)
    beta = 0.1 * jax.random.normal(kb, (Cout,), jnp.float32)

    fwd = jax.jit(lambda xx, ww, gg, bb: basic_conv_forward(
        xx, ww, gamma=gg, beta=bb, stride=1, padding=1,
        relu=True, bn=True, training=True))
    out = fwd(x, weight, gamma, beta)
    jax.block_until_ready(out)

    ref = basic_conv_ref(x, weight, gamma=gamma, beta=beta, stride=1, padding=1,
                         relu=True, bn=True, training=True)
    assert out.shape == (N, Cout, H, W), out.shape
    err = float(jnp.max(jnp.abs(out - ref)))
    assert err < 5e-3, f"max abs err {err}"
    print("KERNEL_OK")
</pallas_src>

<mosaic_0001>
module attributes {stable_mosaic.version = 11 : i64} {
  func.func @kernel(%arg0: i32, %arg1: memref<36x512xf32, #tpu.memory_space<vmem>>, %arg2: memref<8x36xf32, #tpu.memory_space<vmem>>, %arg3: memref<8x1xf32, #tpu.memory_space<vmem>>, %arg4: memref<8x1xf32, #tpu.memory_space<vmem>>, %arg5: memref<8x512xf32, #tpu.memory_space<vmem>>) attributes {dimension_semantics = [#tpu.dimension_semantics<arbitrary>], iteration_bounds = array<i64: 1>, scalar_prefetch = 0 : i64, scratch_operands = 0 : i64, tpu.core_type = #tpu.core_type<tc>, window_params = [{pipeline_mode = #tpu.pipeline_mode<synchronous>, transform_indices = @transform_0, window_bounds = array<i64: 36, 512>}, {pipeline_mode = #tpu.pipeline_mode<synchronous>, transform_indices = @transform_1, window_bounds = array<i64: 8, 36>}, {pipeline_mode = #tpu.pipeline_mode<synchronous>, transform_indices = @transform_2, window_bounds = array<i64: 8, 1>}, {pipeline_mode = #tpu.pipeline_mode<synchronous>, transform_indices = @transform_3, window_bounds = array<i64: 8, 1>}, {pipeline_mode = #tpu.pipeline_mode<synchronous>, transform_indices = @transform_4, window_bounds = array<i64: 8, 512>}]} {
    %c0 = arith.constant 0 : index
    %c0_0 = arith.constant 0 : index
    %0 = vector.load %arg2[%c0, %c0_0] : memref<8x36xf32, #tpu.memory_space<vmem>>, vector<8x36xf32>
    %c0_1 = arith.constant 0 : index
    %c0_2 = arith.constant 0 : index
    %1 = vector.load %arg1[%c0_1, %c0_2] : memref<36x512xf32, #tpu.memory_space<vmem>>, vector<36x512xf32>
    %cst = arith.constant dense<0.000000e+00> : vector<8x512xf32>
    %2 = tpu.matmul %0, %1, %cst {dimension_numbers = #tpu.dot_dimension_numbers<[1], [0], [0], [1], [0, 0, 1, 1], [], []>} : vector<8x36xf32>, vector<36x512xf32>, vector<8x512xf32> -> vector<8x512xf32>
    %cst_3 = arith.constant dense<0.000000e+00> : vector<8xf32>
    %3 = vector.multi_reduction <add>, %2, %cst_3 [1] : vector<8x512xf32> to vector<8xf32>
    %4 = vector.shape_cast %3 : vector<8xf32> to vector<8x1xf32>
    %cst_4 = arith.constant 5.120000e+02 : f32
    %5 = vector.broadcast %cst_4 : f32 to vector<8x1xf32>
    %6 = arith.divf %4, %5 : vector<8x1xf32>
    %7 = vector.broadcast %6 : vector<8x1xf32> to vector<8x512xf32>
    %8 = arith.subf %2, %7 : vector<8x512xf32>
    %9 = arith.mulf %8, %8 : vector<8x512xf32>
    %cst_5 = arith.constant dense<0.000000e+00> : vector<8xf32>
    %10 = vector.multi_reduction <add>, %9, %cst_5 [1] : vector<8x512xf32> to vector<8xf32>
    %11 = vector.shape_cast %10 : vector<8xf32> to vector<8x1xf32>
    %cst_6 = arith.constant 5.120000e+02 : f32
    %12 = vector.broadcast %cst_6 : f32 to vector<8x1xf32>
    %13 = arith.divf %11, %12 : vector<8x1xf32>
    %14 = vector.broadcast %6 : vector<8x1xf32> to vector<8x512xf32>
    %15 = arith.subf %2, %14 : vector<8x512xf32>
    %cst_7 = arith.constant 9.99999974E-6 : f32
    %16 = vector.broadcast %cst_7 : f32 to vector<8x1xf32>
    %17 = arith.addf %13, %16 : vector<8x1xf32>
    %18 = math.rsqrt %17 : vector<8x1xf32>
    %19 = vector.broadcast %18 : vector<8x1xf32> to vector<8x512xf32>
    %20 = arith.mulf %15, %19 : vector<8x512xf32>
    %c0_8 = arith.constant 0 : index
    %c0_9 = arith.constant 0 : index
    %21 = vector.load %arg3[%c0_8, %c0_9] : memref<8x1xf32, #tpu.memory_space<vmem>>, vector<8x1xf32>
    %22 = vector.broadcast %21 : vector<8x1xf32> to vector<8x512xf32>
    %23 = arith.mulf %20, %22 : vector<8x512xf32>
    %c0_10 = arith.constant 0 : index
    %c0_11 = arith.constant 0 : index
    %24 = vector.load %arg4[%c0_10, %c0_11] : memref<8x1xf32, #tpu.memory_space<vmem>>, vector<8x1xf32>
    %25 = vector.broadcast %24 : vector<8x1xf32> to vector<8x512xf32>
    %26 = arith.addf %23, %25 : vector<8x512xf32>
    %cst_12 = arith.constant 0.000000e+00 : f32
    %27 = vector.broadcast %cst_12 : f32 to vector<8x512xf32>
    %28 = arith.maximumf %26, %27 : vector<8x512xf32>
    %c0_13 = arith.constant 0 : index
    %c0_14 = arith.constant 0 : index
    %29 = vector.load %arg5[%c0_13, %c0_14] : memref<8x512xf32, #tpu.memory_space<vmem>>, vector<8x512xf32>
    tpu.vector_store %arg5[%c0_13, %c0_14], %28 {strides = array<i32>} : memref<8x512xf32, #tpu.memory_space<vmem>>, vector<8x512xf32>,
    return
  }
  func.func @transform_0(%arg0: i32) -> (i32, i32) {
    %c0_i32 = arith.constant 0 : i32
    %c0_i32_0 = arith.constant 0 : i32
    %c0_i32_1 = arith.constant 0 : i32
    return %c0_i32, %c0_i32_0 : i32, i32
  }
  func.func @transform_1(%arg0: i32) -> (i32, i32) {
    %c0_i32 = arith.constant 0 : i32
    %c0_i32_0 = arith.constant 0 : i32
    %c0_i32_1 = arith.constant 0 : i32
    return %c0_i32, %c0_i32_0 : i32, i32
  }
  func.func @transform_2(%arg0: i32) -> (i32, i32) {
    %c0_i32 = arith.constant 0 : i32
    %c0_i32_0 = arith.constant 0 : i32
    %c0_i32_1 = arith.constant 0 : i32
    return %c0_i32, %c0_i32_0 : i32, i32
  }
  func.func @transform_3(%arg0: i32) -> (i32, i32) {
    %c0_i32 = arith.constant 0 : i32
    %c0_i32_0 = arith.constant 0 : i32
    %c0_i32_1 = arith.constant 0 : i32
    return %c0_i32, %c0_i32_0 : i32, i32
  }
  func.func @transform_4(%arg0: i32) -> (i32, i32) {
    %c0_i32 = arith.constant 0 : i32
    %c0_i32_0 = arith.constant 0 : i32
    %c0_i32_1 = arith.constant 0 : i32
    return %c0_i32, %c0_i32_0 : i32, i32
  }
}

</mosaic_0001>

<llo_original>
// kernel: _lambda_.1
$region0: #{_lambda_.1}
  #allocation0 [shape = 'u32[]', space=smem, size = 0x4, offset = 0x4, fixed_abs, tag = 'smem constant byte address 0x4 - core index']
  #allocation1 [shape = 'u32[72,128]{1,0:T(1,128)}', space=vmem, size = 0x9000, scoped, tag = 'internal scratch']
  %s0 = inlined_call_operand.vmem [shape: f32[36,512], index: 0, kind: input, shape index: {}]
  %s1 = inlined_call_operand.vmem [shape: f32[8,36], index: 1, kind: input, shape index: {}]
  %s2 = inlined_call_operand.vmem [shape: f32[8,1], index: 2, kind: input, shape index: {}]
  %s3 = inlined_call_operand.vmem [shape: f32[8,1], index: 3, kind: input, shape index: {}]
  %s4 = inlined_call_operand.vmem [shape: f32[8,512], index: 4, kind: output, shape index: {}]
  %s5 = sld [smem:[#allocation0]]
  $region26: #{_lambda_.1} parent=0
    _
  %s7 = ssub.s32 1, %s5
  %s8 = scalar_select 0, %s7, %s5
  // Predicated region
  $region2: #{_lambda_.1} parent=0 // pred_check
    _
  $region3: #{_lambda_.1} parent=0 // pred_check_branch
    %10 = sbr.rel (0) target = $region5
  $region4: #{_lambda_.1} parent=0 // pred_region
    _
  $region5: #{_lambda_.1} parent=0 // pred_fallthru
    _
  // Predicated region
  $region6: #{_lambda_.1} parent=0 // pred_check
    _
  $region7: #{_lambda_.1} parent=0 // pred_check_branch
    %12 = sbr.rel (0) target = $region9
  $region8: #{_lambda_.1} parent=0 // pred_region
    _
  $region9: #{_lambda_.1} parent=0 // pred_fallthru
    _
  // Predicated region
  $region10: #{_lambda_.1} parent=0 // pred_check
    _
  $region11: #{_lambda_.1} parent=0 // pred_check_branch
    %14 = sbr.rel (0) target = $region13
  $region12: #{_lambda_.1} parent=0 // pred_region
    _
  $region13: #{_lambda_.1} parent=0 // pred_fallthru
    _
  // Predicated region
  $region14: #{_lambda_.1} parent=0 // pred_check
    _
  $region15: #{_lambda_.1} parent=0 // pred_check_branch
    %16 = sbr.rel (0) target = $region17
  $region16: #{_lambda_.1} parent=0 // pred_region
    _
  $region17: #{_lambda_.1} parent=0 // pred_fallthru
    _
  %v17 = vld [vmem:[%s1] sm:$0xff]
  %v18 = vld [vmem:[%s0] sm:$0xff]
  %v19 = vld [vmem:[%s0 + $0x8] sm:$0xff]
  %v20 = vld [vmem:[%s0 + $0x10] sm:$0xff]
  %v21 = vld [vmem:[%s0 + $0x18] sm:$0xff]
  %v22 = vld [vmem:[%s0 + $0x20] sm:$0xff]
  %v23 = vld [vmem:[%s0 + $0x28] sm:$0xff]
  %v24 = vld [vmem:[%s0 + $0x30] sm:$0xff]
  %v25 = vld [vmem:[%s0 + $0x38] sm:$0xff]
  %v26 = vld [vmem:[%s0 + $0x40] sm:$0xff]
  %v27 = vld [vmem:[%s0 + $0x48] sm:$0xff]
  %v28 = vld [vmem:[%s0 + $0x50] sm:$0xff]
  %v29 = vld [vmem:[%s0 + $0x58] sm:$0xff]
  %v30 = vld [vmem:[%s0 + $0x60] sm:$0xff]
  %v31 = vld [vmem:[%s0 + $0x68] sm:$0xff]
  %v32 = vld [vmem:[%s0 + $0x70] sm:$0xff]
  %v33 = vld [vmem:[%s0 + $0x78] sm:$0xff]
  %v34 = vld [vmem:[%s0 + $0x80] sm:$0xf]
  %v35 = vld [vmem:[%s0 + $0x88] sm:$0xf]
  %v36 = vld [vmem:[%s0 + $0x90] sm:$0xf]
  %v37 = vld [vmem:[%s0 + $0x98] sm:$0xf]
  %vm38 = vcmask 293888
  %v40 = vsel %vm38, %v17, 0
  %vm42 = vcmask 1043456
  %v44 = vsel %vm42, %v34, 0
  %v47 = vsel %vm42, %v35, 0
  %v50 = vsel %vm42, %v36, 0
  %v53 = vsel %vm42, %v37, 0
  %55 = vmatpush.msra.mxu0 0.0
  %56 = vmatpush.msra.mxu0 0.0
  %57 = vmatpush.msra.mxu0 0.0
  %58 = vmatpush.msra.mxu0 0.0
  %59 = vmatpush.msra.mxu0 0.0
  %60 = vmatpush.msra.mxu0 0.0
  %61 = vmatpush.msra.mxu0 0.0
  %62 = vmatpush.msra.mxu0 0.0
  %63 = vmatpush.msra.mxu0 0.0
  %64 = vmatpush.msra.mxu0 0.0
  %65 = vmatpush.msra.mxu0 0.0
  %66 = vmatpush.msra.mxu0 %v44
  %67 = vmatpush.msra.mxu0 %v30
  %68 = vmatpush.msra.mxu0 %v26
  %69 = vmatpush.msra.mxu0 %v22
  %70 = vmatpush.msra.mxu0 %v18
  %71 = vmatmul.f32.gmra.mxu0 %v40
  %v72 = vpop.f32.mrf.mxu0
  %v73 = vadd.f32 0.0, %v72
  %74 = vdwg.mxu0
  %75 = vmatpush.msra.mxu0 0.0
  %76 = vmatpush.msra.mxu0 0.0
  %77 = vmatpush.msra.mxu0 0.0
  %78 = vmatpush.msra.mxu0 0.0
  %79 = vmatpush.msra.mxu0 0.0
  %80 = vmatpush.msra.mxu0 0.0
  %81 = vmatpush.msra.mxu0 0.0
  %82 = vmatpush.msra.mxu0 0.0
  %83 = vmatpush.msra.mxu0 0.0
  %84 = vmatpush.msra.mxu0 0.0
  %85 = vmatpush.msra.mxu0 0.0
  %86 = vmatpush.msra.mxu0 %v47
  %87 = vmatpush.msra.mxu0 %v31
  %88 = vmatpush.msra.mxu0 %v27
  %89 = vmatpush.msra.mxu0 %v23
  %90 = vmatpush.msra.mxu0 %v19
  %91 = vmatmul.f32.gmra.mxu0 %v40
  %v92 = vpop.f32.mrf.mxu0
  %v93 = vadd.f32 0.0, %v92
  %94 = vdwg.mxu0
  %95 = vmatpush.msra.mxu0 0.0
  %96 = vmatpush.msra.mxu0 0.0
  %97 = vmatpush.msra.mxu0 0.0
  %98 = vmatpush.msra.mxu0 0.0
  %99 = vmatpush.msra.mxu0 0.0
  %100 = vmatpush.msra.mxu0 0.0
  %101 = vmatpush.msra.mxu0 0.0
  %102 = vmatpush.msra.mxu0 0.0
  %103 = vmatpush.msra.mxu0 0.0
  %104 = vmatpush.msra.mxu0 0.0
  %105 = vmatpush.msra.mxu0 0.0
  %106 = vmatpush.msra.mxu0 %v50
  %107 = vmatpush.msra.mxu0 %v32
  %108 = vmatpush.msra.mxu0 %v28
  %109 = vmatpush.msra.mxu0 %v24
  %110 = vmatpush.msra.mxu0 %v20
  %111 = vmatmul.f32.gmra.mxu0 %v40
  %v112 = vpop.f32.mrf.mxu0
  %v113 = vadd.f32 0.0, %v112
  %114 = vdwg.mxu0
  %115 = vmatpush.msra.mxu0 0.0
  %116 = vmatpush.msra.mxu0 0.0
  %117 = vmatpush.msra.mxu0 0.0
  %118 = vmatpush.msra.mxu0 0.0
  %119 = vmatpush.msra.mxu0 0.0
  %120 = vmatpush.msra.mxu0 0.0
  %121 = vmatpush.msra.mxu0 0.0
  %122 = vmatpush.msra.mxu0 0.0
  %123 = vmatpush.msra.mxu0 0.0
  %124 = vmatpush.msra.mxu0 0.0
  %125 = vmatpush.msra.mxu0 0.0
  %126 = vmatpush.msra.mxu0 %v53
  %127 = vmatpush.msra.mxu0 %v33
  %128 = vmatpush.msra.mxu0 %v29
  %129 = vmatpush.msra.mxu0 %v25
  %130 = vmatpush.msra.mxu0 %v21
  %131 = vmatmul.f32.gmra.mxu0 %v40
  %v132 = vpop.f32.mrf.mxu0
  %v133 = vadd.f32 0.0, %v132
  %134 = vdwg.mxu0
  %v135 = vadd.f32 %v73, %v93
  %v136 = vadd.f32 %v135, %v113
  %v137 = vadd.f32 %v136, %v133
  %138 = vadd.xlane.f32.xlu0 %v137
  %v139 = vpop.xlane.xlu0 %138
  %v140 = vrcp.pop 512.0
  %v141 = vmul.f32 512.0, %v140
  %v142 = vsub.f32 1.0, %v141
  %v143 = vmul.f32 %v140, %v142
  %v144 = vadd.f32 %v140, %v143
  %vm145 = vweird.f32 %v140
  %v146 = vsel %vm145, %v140, %v144
  %v147 = vmul.f32 %v139, %v146
  %v148 = vsub.f32 %v73, %v147
  %v149 = vsub.f32 %v93, %v147
  %v150 = vsub.f32 %v113, %v147
  %v151 = vsub.f32 %v133, %v147
  %v152 = vmul.f32 %v148, %v148
  %v153 = vmul.f32 %v149, %v149
  %v154 = vmul.f32 %v150, %v150
  %v155 = vmul.f32 %v151, %v151
  %v156 = vadd.f32 %v152, %v153
  %v157 = vadd.f32 %v156, %v154
  %v158 = vadd.f32 %v157, %v155
  %159 = vadd.xlane.f32.xlu0 %v158
  %v160 = vpop.xlane.xlu0 %159
  %v161 = vmul.f32 %v160, %v146
  %v162 = vadd.f32 %v161, 1e-05
  %v163 = vrsqrt.pop %v162
  %v164 = vmul.f32 %v163, %v162
  %v165 = vmul.f32 %v164, %v163
  %v166 = vmul.f32 0.5, %v165
  %v167 = vsub.f32 1.5, %v166
  %v168 = vmul.f32 %v163, %v167
  %vm169 = vweird.f32 %v162
  %vm170 = vweird.f32 %v163
  %vm171 = vmor %vm169, %vm170
  %v172 = vsel %vm171, %v163, %v168
  %v173 = vmul.f32 %v148, %v172
  %v174 = vmul.f32 %v149, %v172
  %v175 = vmul.f32 %v150, %v172
  %v176 = vmul.f32 %v151, %v172
  %v177 = vld [vmem:[%s2] sm:$0xff]
  %179 = vset.pattern.permute.xlu0 0
  %180 = vperm.xlu0 %179, %v177
  %v181 = vpop.permute.xlu0 %180
  %v183 = vmul.f32 %v173, %v181
  %v184 = vmul.f32 %v174, %v181
  %v185 = vmul.f32 %v175, %v181
  %v186 = vmul.f32 %v176, %v181
  %v187 = vld [vmem:[%s3] sm:$0xff]
  %189 = vset.pattern.permute.xlu0 0
  %190 = vperm.xlu0 %189, %v187
  %v191 = vpop.permute.xlu0 %190
  %v193 = vadd.f32 %v183, %v191
  %v194 = vadd.f32 %v184, %v191
  %v195 = vadd.f32 %v185, %v191
  %v196 = vadd.f32 %v186, %v191
  %v197 = vmax.f32 %v193, 0.0
  %v198 = vmax.f32 %v194, 0.0
  %v199 = vmax.f32 %v195, 0.0
  %v200 = vmax.f32 %v196, 0.0
  %201 = vst [vmem:[%s4] sm:$0xff] %v197
  %202 = vst [vmem:[%s4 + $0x8] sm:$0xff] %v198
  %203 = vst [vmem:[%s4 + $0x10] sm:$0xff] %v199
  %204 = vst [vmem:[%s4 + $0x18] sm:$0xff] %v200
  // Predicated region
  $region18: #{_lambda_.1} parent=0 // pred_check
    _
  $region19: #{_lambda_.1} parent=0 // pred_check_branch
    %206 = sbr.rel (0) target = $region21
  $region20: #{_lambda_.1} parent=0 // pred_region
    _
  $region21: #{_lambda_.1} parent=0 // pred_fallthru
    _
  // Predicated region
  $region22: #{_lambda_.1} parent=0 // pred_check
    _
  $region23: #{_lambda_.1} parent=0 // pred_check_branch
    %208 = sbr.rel (0) target = $region25
  $region24: #{_lambda_.1} parent=0 // pred_region
    _
  $region25: #{_lambda_.1} parent=0 // pred_fallthru
    _

</llo_original>
